<compile_context>
chip_gen: v7x
topology: tpu7x:2x2x1
jax: 0.10.0
libtpu: 0.0.40
codegen_flags: <defaults>
</compile_context>

<pallas_src>
import functools

import jax
import jax.numpy as jnp
from jax.experimental import pallas as pl
from jax.experimental.pallas import tpu as pltpu

_LANE = 128
_TARGET_X_BYTES = 8 * 1024 * 1024        # per-step logits block target (bytes)
_TOTAL_VMEM_BUDGET = 32 * 1024 * 1024    # double-buffered working-set budget
_VMEM_LIMIT_BYTES = 48 * 1024 * 1024     # > 16/32 MiB scoped defaults, < v7x 64 MiB


# --------------------------------------------------------------------------- kernels

def _loss_kernel_rows(x_ref, m_ref, t_ref, out_ref, *, n_rows, n_inner):
    """HW % 128 == 0 path.
    x_ref (1, C, RT, 128) native dtype, m_ref (1, C, 1, 1) f32 selection mask,
    t_ref (1, 1, RT, 128) native dtype, out_ref (1, 1, RT, 128) f32 accumulator
    (resident across the inner spatial grid axis)."""
    so = pl.program_id(1)
    si = pl.program_id(2)

    @pl.when(si == 0)
    def _():
        out_ref[...] = jnp.zeros_like(out_ref)

    x = x_ref[...]                                           # stays bf16 if input is bf16
    neg = jnp.asarray(jnp.finfo(x.dtype).min, dtype=x.dtype)
    selected = m_ref[...] != 0.0                             # (1, C, 1, 1) bool
    masked = jnp.where(selected, x, neg)                     # bf16-safe select (no -1e30 add)
    mx = jnp.max(masked, axis=1, keepdims=True)              # (1, 1, RT, 128) native dtype
    pred = jax.nn.sigmoid(mx.astype(jnp.float32))            # EUP, f32, only RT*128 elems
    tgt = t_ref[...].astype(jnp.float32)
    diff = jnp.abs(pred - tgt)

    # Mask rows of the (possibly partial / fully-padded) last spatial tile.
    rt = out_ref.shape[2]
    row0 = (so * n_inner + si) * rt
    row = jax.lax.broadcasted_iota(jnp.int32, out_ref.shape, 2)
    valid = (row0 + row) < n_rows
    out_ref[...] = out_ref[...] + jnp.where(valid, diff, jnp.float32(0.0))


def _loss_kernel_lanes(x_ref, m_ref, t_ref, out_ref, *, hw, n_inner):
    """HW % 128 != 0 fallback.
    x_ref (1, C, T), m_ref (1, C, 1), t_ref (1, 1, T), out_ref (1, 1, 1, T) f32."""
    so = pl.program_id(1)
    si = pl.program_id(2)

    @pl.when(si == 0)
    def _():
        out_ref[...] = jnp.zeros_like(out_ref)

    x = x_ref[...]
    neg = jnp.asarray(jnp.finfo(x.dtype).min, dtype=x.dtype)
    selected = m_ref[...] != 0.0                             # (1, C, 1) bool
    masked = jnp.where(selected, x, neg)
    mx = jnp.max(masked, axis=1, keepdims=True)              # (1, 1, T)
    pred = jax.nn.sigmoid(mx.astype(jnp.float32))
    tgt = t_ref[...].astype(jnp.float32)
    diff = jnp.abs(pred - tgt)                               # (1, 1, T)

    tlen = out_ref.shape[3]
    lane0 = (so * n_inner + si) * tlen
    lane = jax.lax.broadcasted_iota(jnp.int32, (1, 1, tlen), 2)
    valid = (lane0 + lane) < hw
    contrib = jnp.where(valid, diff, jnp.float32(0.0))       # (1, 1, T)
    out_ref[...] = out_ref[...] + contrib[:, :, None, :]     # (1, 1, 1, T)


# ---------------------------------------------------------------------- tile sizing

def _pick_tile_rows(n_rows, c, isx, ist,
                    target_x_bytes=_TARGET_X_BYTES,
                    total_budget=_TOTAL_VMEM_BUDGET):
    """Row tile (of 128-lane rows) sized in bytes: logits block ~target_x_bytes,
    with double-buffered x + target + f32 out inside total_budget."""
    per_row = _LANE * (2 * c * isx + 2 * ist + 2 * 4)
    rows = min(max(1, total_budget // per_row),
               max(1, target_x_bytes // max(1, c * _LANE * isx)),
               n_rows)
    if rows >= n_rows:
        return n_rows                                  # full row extent (always legal)
    sub = 8 * max(1, 4 // isx)                         # native sublane tile (8 f32 / 16 bf16)
    return min(n_rows, max(sub, (rows // sub) * sub))


def _pick_tile_lanes(hw, c, isx, ist,
                     target_x_bytes=_TARGET_X_BYTES,
                     total_budget=_TOTAL_VMEM_BUDGET):
    """Lane tile for the HW % 128 != 0 fallback; accounts for sublane padding of the
    (C, T) / (1, T) VMEM layouts in the byte budget."""
    if hw <= _LANE:
        return hw
    packx = 8 * max(1, 4 // isx)
    packt = 8 * max(1, 4 // ist)
    c_pad = -(-c // packx) * packx
    per_col = _LANE * (2 * c_pad * isx + 2 * packt * ist + 2 * 8 * 4)
    cols = min(max(1, total_budget // per_col),
               max(1, target_x_bytes // (c_pad * isx * _LANE)),
               hw // _LANE)
    return max(1, cols) * _LANE


# ------------------------------------------------------------------------- wrappers

def _partial_sums_rows(x, t, sel, tile_rows):
    B, C, H, W = x.shape
    HW = H * W
    R = HW // _LANE
    isx = jnp.dtype(x.dtype).itemsize
    ist = jnp.dtype(t.dtype).itemsize
    if tile_rows is None:
        tile_rows = _pick_tile_rows(R, C, isx, ist)
    tile_rows = min(tile_rows, R)
    n_blocks = pl.cdiv(R, tile_rows)
    n_outer = 2 if (B % 2 == 1 and n_blocks >= 2) else 1     # keep both v7x TCs busy
    n_inner = pl.cdiv(n_blocks, n_outer)

    x4 = x.reshape(B, C, R, _LANE)                           # free view, DMA unchanged
    t4 = t.reshape(B, 1, R, _LANE)
    m4 = sel.reshape(B, C, 1, 1)

    def sblk(so, si):
        # Clamp padding tiles introduced by the outer split (contributions masked in-kernel).
        return jnp.minimum(so * n_inner + si, n_blocks - 1)

    kernel = functools.partial(_loss_kernel_rows, n_rows=R, n_inner=n_inner)
    cost = pl.CostEstimate(
        flops=int(3 * B * C * HW + 4 * B * HW),
        transcendentals=int(B * HW),
        bytes_accessed=int(B * C * HW * isx + B * HW * ist + B * C * 4
                           + B * n_outer * tile_rows * _LANE * 4))

    return pl.pallas_call(
        kernel,
        out_shape=jax.ShapeDtypeStruct((B, n_outer, tile_rows, _LANE), jnp.float32),
        grid_spec=pltpu.PrefetchScalarGridSpec(
            num_scalar_prefetch=0,
            grid=(B, n_outer, n_inner),
            in_specs=[
                pl.BlockSpec((1, C, tile_rows, _LANE),
                             lambda b, so, si: (b, 0, sblk(so, si), 0)),
                pl.BlockSpec((1, C, 1, 1), lambda b, so, si: (b, 0, 0, 0)),
                pl.BlockSpec((1, 1, tile_rows, _LANE),
                             lambda b, so, si: (b, 0, sblk(so, si), 0)),
            ],
            out_specs=pl.BlockSpec((1, 1, tile_rows, _LANE),
                                   lambda b, so, si: (b, so, 0, 0)),
        ),
        compiler_params=pltpu.CompilerParams(
            dimension_semantics=("parallel", "parallel", "arbitrary"),
            vmem_limit_bytes=_VMEM_LIMIT_BYTES),
        cost_estimate=cost,
    )(x4, m4, t4)


def _partial_sums_lanes(x, t, sel, tile_lanes):
    B, C, H, W = x.shape
    HW = H * W
    isx = jnp.dtype(x.dtype).itemsize
    ist = jnp.dtype(t.dtype).itemsize
    if tile_lanes is None:
        tile_lanes = _pick_tile_lanes(HW, C, isx, ist)
    tile_lanes = min(tile_lanes, HW)
    n_blocks = pl.cdiv(HW, tile_lanes)
    n_outer = 2 if (B % 2 == 1 and n_blocks >= 2) else 1
    n_inner = pl.cdiv(n_blocks, n_outer)

    x3 = x.reshape(B, C, HW)
    t3 = t.reshape(B, 1, HW)
    m3 = sel.reshape(B, C, 1)

    def sblk(so, si):
        return jnp.minimum(so * n_inner + si, n_blocks - 1)

    kernel = functools.partial(_loss_kernel_lanes, hw=HW, n_inner=n_inner)
    cost = pl.CostEstimate(
        flops=int(3 * B * C * HW + 4 * B * HW),
        transcendentals=int(B * HW),
        bytes_accessed=int(B * C * HW * isx + B * HW * ist + B * C * 4
                           + B * n_outer * tile_lanes * 4))

    return pl.pallas_call(
        kernel,
        out_shape=jax.ShapeDtypeStruct((B, n_outer, 1, tile_lanes), jnp.float32),
        grid_spec=pltpu.PrefetchScalarGridSpec(
            num_scalar_prefetch=0,
            grid=(B, n_outer, n_inner),
            in_specs=[
                pl.BlockSpec((1, C, tile_lanes),
                             lambda b, so, si: (b, 0, sblk(so, si))),
                pl.BlockSpec((1, C, 1), lambda b, so, si: (b, 0, 0)),
                pl.BlockSpec((1, 1, tile_lanes),
                             lambda b, so, si: (b, 0, sblk(so, si))),
            ],
            out_specs=pl.BlockSpec((1, 1, 1, tile_lanes),
                                   lambda b, so, si: (b, so, 0, 0)),
        ),
        compiler_params=pltpu.CompilerParams(
            dimension_semantics=("parallel", "parallel", "arbitrary"),
            vmem_limit_bytes=_VMEM_LIMIT_BYTES),
        cost_estimate=cost,
    )(x3, m3, t3)


def class_heatmap_loss(class_heatmaps, target_heatmap, label_vectors, *,
                       tile_rows=None, tile_lanes=None):
    """JAX/Pallas equivalent of ClassHeatmapLoss.forward with the default L1Loss."""
    # TODO(synk): only the default L1Loss (mean) is implemented; custom
    # heatmap_loss_fn callables are not supported by this kernel.
    B, C, H, W = class_heatmaps.shape
    HW = H * W

    # (B, C) selection mask: 1 = class contributes to the max, 0 = dropped.
    lbl = label_vectors != 0
    has_label = jnp.any(lbl, axis=1, keepdims=True)
    sel = (lbl | ~has_label).astype(jnp.float32)

    if HW % _LANE == 0:
        partial = _partial_sums_rows(class_heatmaps, target_heatmap, sel, tile_rows)
    else:
        partial = _partial_sums_lanes(class_heatmaps, target_heatmap, sel, tile_lanes)
    # Negligible final reduction over the per-(batch, outer-tile) lane partial sums.
    return jnp.sum(partial) / jnp.float32(B * HW)


# ------------------------------------------------------------------------ reference

def _reference_loss(class_heatmaps, target_heatmap, label_vectors):
    """Pure-JAX mirror of the PyTorch loop, for correctness checks."""
    sig = jax.nn.sigmoid(class_heatmaps.astype(jnp.float32))
    B = class_heatmaps.shape[0]
    preds = []
    for b in range(B):
        lbl = label_vectors[b] != 0
        if bool(jnp.any(lbl)):
            sel = sig[b][jnp.where(lbl)[0]]
        else:
            sel = sig[b]
        preds.append(jnp.max(sel, axis=0))
    pred = jnp.stack(preds)[:, None]                         # (B, 1, H, W)
    return jnp.mean(jnp.abs(pred - target_heatmap.astype(jnp.float32)))


if __name__ == "__main__":
    base_key = jax.random.PRNGKey(0)

    def run_case(name, case_idx, B, C, H, W, dtype, no_label_batch=None, **kw):
        k1, k2, k3 = jax.random.split(jax.random.fold_in(base_key, case_idx), 3)
        ch = jax.random.normal(k1, (B, C, H, W), dtype=jnp.float32).astype(dtype)
        tg = jax.random.uniform(k2, (B, 1, H, W), dtype=jnp.float32).astype(dtype)
        lv = (jax.random.uniform(k3, (B, C)) > 0.5).astype(jnp.float32)
        lv = lv.at[:, 0].set(1.0)                   # every row has >= 1 label ...
        if no_label_batch is not None:
            lv = lv.at[no_label_batch].set(0.0)     # ... except this one (fallback path)
        ref = _reference_loss(ch.astype(jnp.float32), tg.astype(jnp.float32), lv)
        out = class_heatmap_loss(ch, tg, lv, **kw)
        jax.block_until_ready(out)
        assert jnp.allclose(out, ref, atol=1e-5, rtol=1e-4), (name, out, ref)

    # 1) primary layout (HW % 128 == 0), f32, auto tile, exercises no-label fallback.
    run_case("base_f32", 1, B=2, C=4, H=16, W=16, dtype=jnp.float32, no_label_batch=1)
    # 2) bf16 inputs, B == 1 -> outer spatial split keeps both v7x TensorCores busy.
    run_case("bf16_b1_split", 2, B=1, C=3, H=64, W=64, dtype=jnp.bfloat16, tile_rows=16)
    # 3) odd batch + odd number of spatial tiles -> clamped & masked padding tile.
    run_case("odd_tiles", 3, B=3, C=2, H=64, W=96, dtype=jnp.float32, tile_rows=16)
    # 4) HW % 128 != 0 and HW < 128 -> lane-layout fallback, single block.
    run_case("small_hw", 4, B=2, C=3, H=10, W=10, dtype=jnp.float32)
    # 5) HW % 128 != 0 with multiple lane tiles -> masked partial last tile.
    run_case("ragged_hw", 5, B=1, C=2, H=18, W=18, dtype=jnp.float32, tile_lanes=128)

    print("KERNEL_OK")
</pallas_src>

<mosaic_0001>
module attributes {stable_mosaic.version = 11 : i64} {
  func.func @_loss_kernel_rows(%arg0: i32, %arg1: i32, %arg2: i32, %arg3: memref<1x4x2x128xf32, #tpu.memory_space<vmem>>, %arg4: memref<1x4x1x1xf32, #tpu.memory_space<vmem>>, %arg5: memref<1x1x2x128xf32, #tpu.memory_space<vmem>>, %arg6: memref<1x1x2x128xf32, #tpu.memory_space<vmem>>) attributes {dimension_semantics = [#tpu.dimension_semantics<parallel>, #tpu.dimension_semantics<parallel>, #tpu.dimension_semantics<arbitrary>], iteration_bounds = array<i64: 2, 1, 1>, scalar_prefetch = 0 : i64, scratch_operands = 0 : i64, tpu.core_type = #tpu.core_type<tc>, window_params = [{transform_indices = @transform_0, window_bounds = array<i64: 1, 4, 2, 128>}, {transform_indices = @transform_1, window_bounds = array<i64: 1, 4, 1, 1>}, {transform_indices = @transform_2, window_bounds = array<i64: 1, 1, 2, 128>}, {transform_indices = @transform_3, window_bounds = array<i64: 1, 1, 2, 128>}]} {
    %c0_i32 = arith.constant 0 : i32
    %0 = arith.cmpi eq, %arg2, %c0_i32 : i32
    %1 = arith.extui %0 : i1 to i32
    %c0_i32_0 = arith.constant 0 : i32
    %2 = arith.cmpi ne, %1, %c0_i32_0 : i32
    scf.if %2 {
      %cst_25 = arith.constant 0.000000e+00 : f32
      %34 = vector.broadcast %cst_25 : f32 to vector<1x1x2x128xf32>
      %c0_26 = arith.constant 0 : index
      %c0_27 = arith.constant 0 : index
      %c0_28 = arith.constant 0 : index
      %c0_29 = arith.constant 0 : index
      %35 = vector.load %arg6[%c0_26, %c0_27, %c0_28, %c0_29] : memref<1x1x2x128xf32, #tpu.memory_space<vmem>>, vector<1x1x2x128xf32>
      tpu.vector_store %arg6[%c0_26, %c0_27, %c0_28, %c0_29], %34 {strides = array<i32>} : memref<1x1x2x128xf32, #tpu.memory_space<vmem>>, vector<1x1x2x128xf32>,
    } else {
    }
    %c0 = arith.constant 0 : index
    %c0_1 = arith.constant 0 : index
    %c0_2 = arith.constant 0 : index
    %c0_3 = arith.constant 0 : index
    %3 = vector.load %arg3[%c0, %c0_1, %c0_2, %c0_3] : memref<1x4x2x128xf32, #tpu.memory_space<vmem>>, vector<1x4x2x128xf32>
    %c0_4 = arith.constant 0 : index
    %c0_5 = arith.constant 0 : index
    %c0_6 = arith.constant 0 : index
    %c0_7 = arith.constant 0 : index
    %4 = vector.load %arg4[%c0_4, %c0_5, %c0_6, %c0_7] : memref<1x4x1x1xf32, #tpu.memory_space<vmem>>, vector<1x4x1x1xf32>
    %cst = arith.constant 0.000000e+00 : f32
    %5 = vector.broadcast %cst : f32 to vector<1x4x1x1xf32>
    %6 = arith.cmpf one, %4, %5 : vector<1x4x1x1xf32>
    %cst_8 = arith.constant -3.40282347E+38 : f32
    %7 = vector.shape_cast %6 : vector<1x4x1x1xi1> to vector<1x4x1x1xi1>
    %8 = vector.broadcast %7 : vector<1x4x1x1xi1> to vector<1x4x2x128xi1>
    %9 = vector.broadcast %cst_8 : f32 to vector<1x4x2x128xf32>
    %10 = arith.select %8, %3, %9 : vector<1x4x2x128xi1>, vector<1x4x2x128xf32>
    %cst_9 = arith.constant dense<0xFF800000> : vector<1x2x128xf32>
    %11 = vector.multi_reduction <maximumf>, %10, %cst_9 [1] : vector<1x4x2x128xf32> to vector<1x2x128xf32>
    %12 = vector.shape_cast %11 : vector<1x2x128xf32> to vector<1x1x2x128xf32>
    %13 = arith.negf %12 : vector<1x1x2x128xf32>
    %14 = math.exp %13 : vector<1x1x2x128xf32>
    %cst_10 = arith.constant 1.000000e+00 : f32
    %15 = vector.broadcast %cst_10 : f32 to vector<1x1x2x128xf32>
    %16 = arith.addf %15, %14 : vector<1x1x2x128xf32>
    %17 = arith.divf %15, %16 : vector<1x1x2x128xf32>
    %c0_11 = arith.constant 0 : index
    %c0_12 = arith.constant 0 : index
    %c0_13 = arith.constant 0 : index
    %c0_14 = arith.constant 0 : index
    %18 = vector.load %arg5[%c0_11, %c0_12, %c0_13, %c0_14] : memref<1x1x2x128xf32, #tpu.memory_space<vmem>>, vector<1x1x2x128xf32>
    %19 = arith.subf %17, %18 : vector<1x1x2x128xf32>
    %20 = math.absf %19 : vector<1x1x2x128xf32>
    %c1_i32 = arith.constant 1 : i32
    %21 = arith.muli %arg1, %c1_i32 : i32
    %22 = arith.addi %21, %arg2 : i32
    %c2_i32 = arith.constant 2 : i32
    %23 = arith.muli %22, %c2_i32 : i32
    %24 = tpu.iota {dimensions = array<i32: 2>} : vector<1x1x2x128xi32>
    %25 = vector.broadcast %23 : i32 to vector<1x1x2x128xi32>
    %26 = arith.addi %25, %24 : vector<1x1x2x128xi32>
    %c2_i32_15 = arith.constant 2 : i32
    %27 = vector.broadcast %c2_i32_15 : i32 to vector<1x1x2x128xi32>
    %28 = arith.cmpi slt, %26, %27 : vector<1x1x2x128xi32>
    %c0_16 = arith.constant 0 : index
    %c0_17 = arith.constant 0 : index
    %c0_18 = arith.constant 0 : index
    %c0_19 = arith.constant 0 : index
    %29 = vector.load %arg6[%c0_16, %c0_17, %c0_18, %c0_19] : memref<1x1x2x128xf32, #tpu.memory_space<vmem>>, vector<1x1x2x128xf32>
    %cst_20 = arith.constant 0.000000e+00 : f32
    %30 = vector.broadcast %cst_20 : f32 to vector<1x1x2x128xf32>
    %31 = arith.select %28, %20, %30 : vector<1x1x2x128xi1>, vector<1x1x2x128xf32>
    %32 = arith.addf %29, %31 : vector<1x1x2x128xf32>
    %c0_21 = arith.constant 0 : index
    %c0_22 = arith.constant 0 : index
    %c0_23 = arith.constant 0 : index
    %c0_24 = arith.constant 0 : index
    %33 = vector.load %arg6[%c0_21, %c0_22, %c0_23, %c0_24] : memref<1x1x2x128xf32, #tpu.memory_space<vmem>>, vector<1x1x2x128xf32>
    tpu.vector_store %arg6[%c0_21, %c0_22, %c0_23, %c0_24], %32 {strides = array<i32>} : memref<1x1x2x128xf32, #tpu.memory_space<vmem>>, vector<1x1x2x128xf32>,
    return
  }
  func.func @transform_0(%arg0: i32, %arg1: i32, %arg2: i32) -> (i32, i32, i32, i32) {
    %c1_i32 = arith.constant 1 : i32
    %0 = arith.muli %arg1, %c1_i32 : i32
    %1 = arith.addi %0, %arg2 : i32
    %c0_i32 = arith.constant 0 : i32
    %2 = arith.minsi %1, %c0_i32 : i32
    %c0_i32_0 = arith.constant 0 : i32
    %c0_i32_1 = arith.constant 0 : i32
    %c0_i32_2 = arith.constant 0 : i32
    return %arg0, %c0_i32_0, %2, %c0_i32_1 : i32, i32, i32, i32
  }
  func.func @transform_1(%arg0: i32, %arg1: i32, %arg2: i32) -> (i32, i32, i32, i32) {
    %c0_i32 = arith.constant 0 : i32
    %c0_i32_0 = arith.constant 0 : i32
    %c0_i32_1 = arith.constant 0 : i32
    %c0_i32_2 = arith.constant 0 : i32
    return %arg0, %c0_i32, %c0_i32_0, %c0_i32_1 : i32, i32, i32, i32
  }
  func.func @transform_2(%arg0: i32, %arg1: i32, %arg2: i32) -> (i32, i32, i32, i32) {
    %c1_i32 = arith.constant 1 : i32
    %0 = arith.muli %arg1, %c1_i32 : i32
    %1 = arith.addi %0, %arg2 : i32
    %c0_i32 = arith.constant 0 : i32
    %2 = arith.minsi %1, %c0_i32 : i32
    %c0_i32_0 = arith.constant 0 : i32
    %c0_i32_1 = arith.constant 0 : i32
    %c0_i32_2 = arith.constant 0 : i32
    return %arg0, %c0_i32_0, %2, %c0_i32_1 : i32, i32, i32, i32
  }
  func.func @transform_3(%arg0: i32, %arg1: i32, %arg2: i32) -> (i32, i32, i32, i32) {
    %c0_i32 = arith.constant 0 : i32
    %c0_i32_0 = arith.constant 0 : i32
    %c0_i32_1 = arith.constant 0 : i32
    return %arg0, %arg1, %c0_i32, %c0_i32_0 : i32, i32, i32, i32
  }
}

</mosaic_0001>

<llo_original>
// kernel: tpu_custom_call.1
$region0: #{tpu_custom_call.1}
  #allocation0 [shape = 'u32[]', space=smem, size = 0x4, offset = 0x4, fixed_abs, tag = 'smem constant byte address 0x4 - core index']
  #allocation1 [shape = 'u32[144,128]{1,0:T(1,128)}', space=vmem, size = 0x12000, scoped, tag = 'internal scratch']
  %s0 = inlined_call_operand.hbm [shape: f32[2,4,2,128], index: 0, kind: input, shape index: {}]
  %s1 = inlined_call_operand.vmem [shape: f32[2,4,1,1], index: 1, kind: input, shape index: {}]
  %s2 = inlined_call_operand.vmem [shape: f32[2,1,2,128], index: 2, kind: input, shape index: {}]
  %s3 = inlined_call_operand.hbm [shape: f32[2,1,2,128], index: 3, kind: output, shape index: {}]
  %s4 = sld [smem:[#allocation0]]
  $region53: #{tpu_custom_call.1} parent=0
    _
  %s6 = ssub.s32 1, %s4
  %s7 = scalar_select 0, %s6, %s4
  $region1: #{tpu_custom_call.1} parent=0
    #allocation2 [shape = 'u8[8192]{0}', space=vmem, size = 0x2000, scoped, tag = 'input window, operand 0']
    #allocation3 [shape = 's32[2]{0}', space=sflag, size = 0x8, scoped, tag = 'scoped memory for tpu_custom_call.1']
    #allocation4 [shape = 's32[2]{0}', space=sflag, size = 0x8, scoped, tag = 'scoped memory for tpu_custom_call.1']
    #allocation5 [shape = 'u8[2048]{0}', space=vmem, size = 0x800, scoped, tag = 'output window, operand 0']
    %8 = vsyncpa [#allocation3], 0
    %s9 = scalar_lea.sflag [#allocation3], 1
    %10 = vsyncpa %s9, 0
    %11 = vsyncpa [#allocation4], 0
    %s12 = scalar_lea.sflag [#allocation4], 1
    %13 = vsyncpa %s12, 0
    loop: start=0, step=1, limit=4
    $region2: #{tpu_custom_call.1} parent=1 // loop_pre_header
      _
    $region3: #{tpu_custom_call.1} parent=1 // loop_header
      %s15 = sphi 0, %s19
      %p16 = scmp.ge.s32.totalorder %s15, 4
      %s22 = sphi 0, %s41
      %s23 = sphi 0, %s37
      %s24 = sphi 0, %s33
      %s25 = sphi 0, %s22
      %s26 = sphi 0, %s23
      %s27 = sphi 0, %s24
      %s28 = sphi 0, %s25
      %s29 = sphi 0, %s26
      %s30 = sphi 0, %s27
      %s52 = sphi 0, %s54
      %s55 = sphi 0, %s52
      %s56 = sphi 0, %s55
      %s72 = sphi 0, %s56
      %s78 = sphi 0, %s80
      %s81 = sphi 0, %s78
      %s82 = sphi 0, %s81
      %s98 = sphi 0, %s82
      %s112 = sphi 0, %s114
      %s115 = sphi 0, %s112
      %s116 = sphi 0, %s115
      %s132 = sphi 0, %s116
      %s140 = sphi 0, %s142
      %s143 = sphi 0, %s140
      %s144 = sphi 0, %s143
      %s160 = sphi 0, %s144
    $region4: #{tpu_custom_call.1} parent=1 // loop_header_branch
      %18 = sbr.rel (%p16) target = $region8
    $region5: #{tpu_custom_call.1} parent=1 // loop_body
      %s20 = ssub.s32 %s15, 1
      %s21 = ssub.s32 %s15, 2
      %s31 = sadd.s32 1, %s24
      %p32 = scmp.ge.s32.totalorder %s31, 1
      %s33 = scalar_select %p32, 0, %s31
      %s34 = sadd.s32 1, %s23
      %s35 = scalar_select %p32, %s34, %s23
      %p36 = scmp.ge.s32.totalorder %s35, 1
      %s37 = scalar_select %p36, 0, %s35
      %s38 = sadd.s32 1, %s22
      %s39 = scalar_select %p36, %s38, %s22
      %p40 = scmp.ge.s32.totalorder %s39, 2
      %s41 = scalar_select %p40, 0, %s39
      %s42 = sadd.s32 %s23, %s24
      %p43 = scmp.lt.s32.totalorder %s42, 0
      %s44 = scalar_select %p43, %s42, 0
      %s45 = sadd.s32 %s37, %s33
      %p46 = scmp.lt.s32.totalorder %s45, 0
      %s47 = scalar_select %p46, %s45, 0
      %s48 = ssub.s32 %s22, %s41
      %s49 = ssub.s32 %s44, %s47
      %s50 = sor.u32 %s48, %s49
      %p51 = scmp.eq.s32.totalorder %s50, 0
      %s53 = sadd.s32 %s52, 1
      %s54 = scalar_select %p51, %s52, %s53
      %p57 = pneg %p51
      %p58 = scmp.eq.s32.totalorder %s15, 1
      %p59 = por %p57, %p58
      %p60 = scmp.ne.s32.totalorder %s52, %s55
      %p61 = scmp.eq.s32.totalorder %s15, 0
      %p62 = por %p60, %p61
      %p63 = scmp.ne.s32.totalorder %s52, %s55
      %p64 = scmp.eq.s32.totalorder %s20, 1
      %p65 = por %p63, %p64
      %p66 = scmp.ne.s32.totalorder %s55, %s56
      %p67 = scmp.eq.s32.totalorder %s20, 0
      %p68 = por %p66, %p67
      %p69 = scmp.ne.s32.totalorder %s55, %s56
      %p70 = scmp.eq.s32.totalorder %s21, 1
      %p71 = por %p69, %p70
      %p73 = scmp.ne.s32.totalorder %s56, %s72
      %p74 = scmp.eq.s32.totalorder %s21, 0
      %p75 = por %p73, %p74
      %s76 = ssub.s32 %s22, %s41
      %p77 = scmp.eq.s32.totalorder %s76, 0
      %s79 = sadd.s32 %s78, 1
      %s80 = scalar_select %p77, %s78, %s79
      %p83 = pneg %p77
      %p84 = scmp.eq.s32.totalorder %s15, 1
      %p85 = por %p83, %p84
      %p86 = scmp.ne.s32.totalorder %s78, %s81
      %p87 = scmp.eq.s32.totalorder %s15, 0
      %p88 = por %p86, %p87
      %p89 = scmp.ne.s32.totalorder %s78, %s81
      %p90 = scmp.eq.s32.totalorder %s20, 1
      %p91 = por %p89, %p90
      %p92 = scmp.ne.s32.totalorder %s81, %s82
      %p93 = scmp.eq.s32.totalorder %s20, 0
      %p94 = por %p92, %p93
      %p95 = scmp.ne.s32.totalorder %s81, %s82
      %p96 = scmp.eq.s32.totalorder %s21, 1
      %p97 = por %p95, %p96
      %p99 = scmp.ne.s32.totalorder %s82, %s98
      %p100 = scmp.eq.s32.totalorder %s21, 0
      %p101 = por %p99, %p100
      %s102 = sadd.s32 %s23, %s24
      %p103 = scmp.lt.s32.totalorder %s102, 0
      %s104 = scalar_select %p103, %s102, 0
      %s105 = sadd.s32 %s37, %s33
      %p106 = scmp.lt.s32.totalorder %s105, 0
      %s107 = scalar_select %p106, %s105, 0
      %s108 = ssub.s32 %s22, %s41
      %s109 = ssub.s32 %s104, %s107
      %s110 = sor.u32 %s108, %s109
      %p111 = scmp.eq.s32.totalorder %s110, 0
      %s113 = sadd.s32 %s112, 1
      %s114 = scalar_select %p111, %s112, %s113
      %p117 = pneg %p111
      %p118 = scmp.eq.s32.totalorder %s15, 1
      %p119 = por %p117, %p118
      %p120 = scmp.ne.s32.totalorder %s112, %s115
      %p121 = scmp.eq.s32.totalorder %s15, 0
      %p122 = por %p120, %p121
      %p123 = scmp.ne.s32.totalorder %s112, %s115
      %p124 = scmp.eq.s32.totalorder %s20, 1
      %p125 = por %p123, %p124
      %p126 = scmp.ne.s32.totalorder %s115, %s116
      %p127 = scmp.eq.s32.totalorder %s20, 0
      %p128 = por %p126, %p127
      %p129 = scmp.ne.s32.totalorder %s115, %s116
      %p130 = scmp.eq.s32.totalorder %s21, 1
      %p131 = por %p129, %p130
      %p133 = scmp.ne.s32.totalorder %s116, %s132
      %p134 = scmp.eq.s32.totalorder %s21, 0
      %p135 = por %p133, %p134
      %s136 = ssub.s32 %s22, %s41
      %s137 = ssub.s32 %s23, %s37
      %s138 = sor.u32 %s136, %s137
      %p139 = scmp.eq.s32.totalorder %s138, 0
      %s141 = sadd.s32 %s140, 1
      %s142 = scalar_select %p139, %s140, %s141
      %p145 = pneg %p139
      %p146 = scmp.eq.s32.totalorder %s15, 1
      %p147 = por %p145, %p146
      %p148 = scmp.ne.s32.totalorder %s140, %s143
      %p149 = scmp.eq.s32.totalorder %s15, 0
      %p150 = por %p148, %p149
      %p151 = scmp.ne.s32.totalorder %s140, %s143
      %p152 = scmp.eq.s32.totalorder %s20, 1
      %p153 = por %p151, %p152
      %p154 = scmp.ne.s32.totalorder %s143, %s144
      %p155 = scmp.eq.s32.totalorder %s20, 0
      %p156 = por %p154, %p155
      %p157 = scmp.ne.s32.totalorder %s143, %s144
      %p158 = scmp.eq.s32.totalorder %s21, 1
      %p159 = por %p157, %p158
      %p161 = scmp.ne.s32.totalorder %s144, %s160
      %p162 = scmp.eq.s32.totalorder %s21, 0
      %p163 = por %p161, %p162
      %p164 = scmp.le.s32.totalorder 1, %s15
      %p165 = scmp.lt.s32.totalorder %s15, 3
      %p166 = pnand %p164, %p165
      %p167 = pneg %p166
      // Predicated region
      $region9: #{tpu_custom_call.1} parent=5 // pred_check
        _
      $region10: #{tpu_custom_call.1} parent=5 // pred_check_branch
        %169 = sbr.rel (%p166) target = $region12
      $region11: #{tpu_custom_call.1} parent=5 // pred_region
        %s170 = ssub.s32 %s15, 1
      $region12: #{tpu_custom_call.1} parent=5 // pred_fallthru
        _
      %p171 = scmp.lt.s32.totalorder %s15, 2
      // Predicated region
      $region13: #{tpu_custom_call.1} parent=5 // pred_check
        %p172 = pneg %p171
      $region14: #{tpu_custom_call.1} parent=5 // pred_check_branch
        %174 = sbr.rel (%p172) target = $region16
      $region15: #{tpu_custom_call.1} parent=5 // pred_region
        // Predicated region
        $region17: #{tpu_custom_call.1} parent=15 // pred_check
          %p175 = pneg %p62
        $region18: #{tpu_custom_call.1} parent=15 // pred_check_branch
          %177 = sbr.rel (%p175) target = $region20
        $region19: #{tpu_custom_call.1} parent=15 // pred_region
          %s178 = sand.u32 %s52, 1
          %s179 = scalar_lea.sflag [#allocation3], %s178
          %s180 = sand.u32 %s52, 1
          %s181 = smul.addr %s180, 8
          %s182 = scalar_lea.vmem [#allocation2], %s181
          %s183 = sadd.s32 %s23, %s24
          %p184 = scmp.lt.s32.totalorder %s183, 0
          %s185 = scalar_select %p184, %s183, 0
          %s187 = ssub.s32 128, 128
          %188 = vsyncadd %s179, %s187
          %s189 = smul.addr %s22, 4
          %s190 = sadd.s32 %s185, %s189
          %s191 = smul.addr %s190, 32
          %s192 = scalar_lea.hbm %s0, %s191
          %s193 = sshll.u32 %s182, 4
          %s194 = int_to_ptr.vmem [resolvable:$true] %s193
          %199 = dma.hbm_to_vmem [thread:$0]  %s192, 128, %s194, %s179, 32, 32, 2
        $region20: #{tpu_custom_call.1} parent=15 // pred_fallthru
          _
        // Predicated region
        $region21: #{tpu_custom_call.1} parent=15 // pred_check
          %p200 = pneg %p88
        $region22: #{tpu_custom_call.1} parent=15 // pred_check_branch
          %202 = sbr.rel (%p200) target = $region24
        $region23: #{tpu_custom_call.1} parent=15 // pred_region
          %p203 = scmp.lt.s32.totalorder %s22, 1
          %s204 = scalar_select %p203, %s22, 1
          %s205 = smul.addr %s204, 4
          %s206 = scalar_lea.vmem %s1, %s205
        $region24: #{tpu_custom_call.1} parent=15 // pred_fallthru
          _
        // Predicated region
        $region25: #{tpu_custom_call.1} parent=15 // pred_check
          %p207 = pneg %p122
        $region26: #{tpu_custom_call.1} parent=15 // pred_check_branch
          %209 = sbr.rel (%p207) target = $region28
        $region27: #{tpu_custom_call.1} parent=15 // pred_region
          %s210 = sadd.s32 %s23, %s24
          %p211 = scmp.lt.s32.totalorder %s210, 0
          %s212 = scalar_select %p211, %s210, 0
          %p213 = scmp.lt.s32.totalorder %s22, 1
          %s214 = scalar_select %p213, %s22, 1
          %p215 = scmp.lt.s32.totalorder %s212, 0
          %s216 = scalar_select %p215, %s212, 0
          %s217 = sadd.s32 %s216, %s214
          %s218 = smul.addr %s217, 2
          %s219 = scalar_lea.vmem %s2, %s218
          %s220 = sadd.s32 %s23, %s24
          %p221 = scmp.lt.s32.totalorder %s220, 0
          %s222 = scalar_select %p221, %s220, 0
        $region28: #{tpu_custom_call.1} parent=15 // pred_fallthru
          _
      $region16: #{tpu_custom_call.1} parent=5 // pred_fallthru
        _
      %p223 = scmp.le.s32.totalorder 1, %s15
      %p224 = scmp.lt.s32.totalorder %s15, 3
      %p225 = pnand %p223, %p224
      %p226 = pneg %p225
      // Predicated region
      $region29: #{tpu_custom_call.1} parent=5 // pred_check
        _
      $region30: #{tpu_custom_call.1} parent=5 // pred_check_branch
        %228 = sbr.rel (%p225) target = $region32
      $region31: #{tpu_custom_call.1} parent=5 // pred_region
        %s229 = ssub.s32 %s15, 1
        %s230 = sand.u32 %s55, 1
        %s231 = scalar_lea.sflag [#allocation3], %s230
        %s232 = sand.u32 %s55, 1
        %s233 = smul.addr %s232, 8
        %s234 = scalar_lea.vmem [#allocation2], %s233
        // Predicated region
        $region33: #{tpu_custom_call.1} parent=31 // pred_check
          %p235 = pneg %p68
        $region34: #{tpu_custom_call.1} parent=31 // pred_check_branch
          %237 = sbr.rel (%p235) target = $region36
        $region35: #{tpu_custom_call.1} parent=31 // pred_region
          %238 = dma.done %s231, 128
        $region36: #{tpu_custom_call.1} parent=31 // pred_fallthru
          _
        %s239 = sand.u32 %s55, 1
        %s240 = scalar_lea.sflag [#allocation3], %s239
        %s241 = sand.u32 %s55, 1
        %s242 = smul.addr %s241, 8
        %s243 = scalar_lea.vmem [#allocation2], %s242
        %p244 = pneg %p68
        %p245 = pneg %p65
        %p246 = scmp.lt.s32.totalorder %s25, 1
        %s247 = scalar_select %p246, %s25, 1
        %s248 = smul.addr %s247, 4
        %s249 = scalar_lea.vmem %s1, %s248
        %p250 = pneg %p94
        %p251 = pneg %p91
        %s252 = sadd.s32 %s26, %s27
        %p253 = scmp.lt.s32.totalorder %s252, 0
        %s254 = scalar_select %p253, %s252, 0
        %p255 = scmp.lt.s32.totalorder %s25, 1
        %s256 = scalar_select %p255, %s25, 1
        %p257 = scmp.lt.s32.totalorder %s254, 0
        %s258 = scalar_select %p257, %s254, 0
        %s259 = sadd.s32 %s258, %s256
        %s260 = smul.addr %s259, 2
        %s261 = scalar_lea.vmem %s2, %s260
        %p262 = pneg %p128
        %p263 = pneg %p125
        %p264 = pneg %p156
        %p265 = pneg %p153
        %s266 = sand.u32 %s143, 1
        %s267 = scalar_lea.sflag [#allocation4], %s266
        %s268 = sand.u32 %s143, 1
        %s269 = smul.addr %s268, 2
        %s270 = scalar_lea.vmem [#allocation5], %s269
        %s271 = sadd.s32 %s26, %s27
        %p272 = scmp.lt.s32.totalorder %s271, 0
        %s273 = scalar_select %p272, %s271, 0
        %p274 = scmp.lt.s32.totalorder %s25, 1
        %s275 = scalar_select %p274, %s25, 1
        %s276 = smul.addr %s275, 4
        %s277 = scalar_lea.vmem %s1, %s276
        %s278 = sadd.s32 %s26, %s27
        %p279 = scmp.lt.s32.totalorder %s278, 0
        %s280 = scalar_select %p279, %s278, 0
        %p281 = scmp.lt.s32.totalorder %s25, 1
        %s282 = scalar_select %p281, %s25, 1
        %p283 = scmp.lt.s32.totalorder %s280, 0
        %s284 = scalar_select %p283, %s280, 0
        %s285 = sadd.s32 %s284, %s282
        %s286 = smul.addr %s285, 2
        %s287 = scalar_lea.vmem %s2, %s286
        %s288 = sadd.s32 %s26, %s27
        %p289 = scmp.lt.s32.totalorder %s288, 0
        %s290 = scalar_select %p289, %s288, 0
        %p291 = scmp.eq.s32.totalorder %s27, 0
        // Predicated region
        $region37: #{tpu_custom_call.1} parent=31 // pred_check
          %p292 = pneg %p291
        $region38: #{tpu_custom_call.1} parent=31 // pred_check_branch
          %294 = sbr.rel (%p292) target = $region40
        $region39: #{tpu_custom_call.1} parent=31 // pred_region
          %295 = vst [vmem:[%s270] sm:$0x3] 0.0
        $region40: #{tpu_custom_call.1} parent=31 // pred_fallthru
          _
        %v296 = vld [vmem:[%s234] sm:$0x3]
        %v297 = vld [vmem:[%s234 + $0x2] sm:$0x3]
        %v298 = vld [vmem:[%s234 + $0x4] sm:$0x3]
        %v299 = vld [vmem:[%s234 + $0x6] sm:$0x3]
        %v300 = vld [vmem:[%s277] sm:$0x1]
        %v301 = vld [vmem:[%s277 + $0x1] sm:$0x1]
        %v302 = vld [vmem:[%s277 + $0x2] sm:$0x1]
        %v303 = vld [vmem:[%s277 + $0x3] sm:$0x1]
        %vm304 = vcmp.ne.f32.partialorder %v300, 0.0
        %vm305 = vcmp.ne.f32.partialorder %v301, 0.0
        %vm306 = vcmp.ne.f32.partialorder %v302, 0.0
        %vm307 = vcmp.ne.f32.partialorder %v303, 0.0
        %v308 = vsel %vm304, 1, 0
        %v309 = vsel %vm305, 1, 0
        %v310 = vsel %vm306, 1, 0
        %v311 = vsel %vm307, 1, 0
        %v312 = vlaneseq
        %v313 = vshrl.u32 %v312, 7
        %v314 = vsub.s32 0, %v313
        %v315 = vrot.slane %v308, %v314
        %v316 = vlaneseq
        %v317 = vshrl.u32 %v316, 7
        %v318 = vsub.s32 0, %v317
        %v319 = vrot.slane %v309, %v318
        %v320 = vlaneseq
        %v321 = vshrl.u32 %v320, 7
        %v322 = vsub.s32 0, %v321
        %v323 = vrot.slane %v310, %v322
        %v324 = vlaneseq
        %v325 = vshrl.u32 %v324, 7
        %v326 = vsub.s32 0, %v325
        %v327 = vrot.slane %v311, %v326
        %328 = vset.pattern.permute.xlu0 0
        %329 = vperm.xlu0 %328, %v315
        %v330 = vpop.permute.xlu0 %329
        %331 = vset.pattern.permute.xlu0 0
        %332 = vperm.xlu0 %331, %v319
        %v333 = vpop.permute.xlu0 %332
        %334 = vset.pattern.permute.xlu0 0
        %335 = vperm.xlu0 %334, %v323
        %v336 = vpop.permute.xlu0 %335
        %337 = vset.pattern.permute.xlu0 0
        %338 = vperm.xlu0 %337, %v327
        %v339 = vpop.permute.xlu0 %338
        %vm340 = vcmp.eq.s32.totalorder %v330, 1
        %vm341 = vcmp.eq.s32.totalorder %v333, 1
        %vm342 = vcmp.eq.s32.totalorder %v336, 1
        %vm343 = vcmp.eq.s32.totalorder %v339, 1
        %v344 = vsel %vm340, %v296, -3.4028235e+38
        %v345 = vsel %vm341, %v297, -3.4028235e+38
        %v346 = vsel %vm342, %v298, -3.4028235e+38
        %v347 = vsel %vm343, %v299, -3.4028235e+38
        %vm348 = vcmask 1041408
        %v349 = vsel %vm348, %v344, -inf
        %v350 = vsel %vm348, %v345, -inf
        %v351 = vsel %vm348, %v346, -inf
        %v352 = vsel %vm348, %v347, -inf
        %v353 = vmax.f32 %v349, %v350
        %v354 = vmax.f32 %v351, %v352
        %v355 = vmax.f32 %v353, %v354
        %v356 = vxor.u32 %v355, 2147483648
        %v357 = vmul.f32 %v356, 1.442695
        %v358 = vpow.pop %v357
        %v359 = vadd.f32 %v358, 1.0
        %v360 = vrcp.pop %v359
        %v361 = vmul.f32 1.0, %v360
        %v362 = vld [vmem:[%s287] sm:$0x3]
        %v363 = vsub.f32 %v361, %v362
        %v364 = vand.u32 2147483647, %v363
        %s365 = sadd.s32 %s26, %s27
        %s366 = smul.u32 %s365, 2
        %v367 = vlaneseq
        %v368 = vshrl.u32 %v367, 7
        %v369 = vstv %s366
        %v370 = vadd.s32 %v369, %v368
        %vm371 = vcmp.lt.s32.totalorder %v370, 2
        %v372 = vld [vmem:[%s270] sm:$0x3]
        %v373 = vsel %vm371, %v364, 0.0
        %v374 = vadd.f32 %v372, %v373
        %375 = vst [vmem:[%s270] sm:$0x3] %v374
        %s376 = sand.u32 %s143, 1
        %s377 = scalar_lea.sflag [#allocation4], %s376
        %s378 = sand.u32 %s143, 1
        %s379 = smul.addr %s378, 2
        %s380 = scalar_lea.vmem [#allocation5], %s379
        // Predicated region
        $region41: #{tpu_custom_call.1} parent=31 // pred_check
          %p381 = pneg %p153
        $region42: #{tpu_custom_call.1} parent=31 // pred_check_branch
          %383 = sbr.rel (%p381) target = $region44
        $region43: #{tpu_custom_call.1} parent=31 // pred_region
          %s385 = ssub.s32 32, 32
          %386 = vsyncadd %s377, %s385
          %s387 = sadd.s32 %s26, %s25
          %s388 = smul.addr %s387, 32
          %s389 = scalar_lea.hbm %s3, %s388
          %s391 = sshll.u32 %s380, 4
          %s392 = int_to_ptr.vmem [resolvable:$true] %s391
          %394 = dma.vmem_to_hbm [thread:$0]  %s392, 32, %s389, %s377
        $region44: #{tpu_custom_call.1} parent=31 // pred_fallthru
          _
      $region32: #{tpu_custom_call.1} parent=5 // pred_fallthru
        _
      %p395 = scmp.le.s32.totalorder 2, %s15
      // Predicated region
      $region45: #{tpu_custom_call.1} parent=5 // pred_check
        %p396 = pneg %p395
      $region46: #{tpu_custom_call.1} parent=5 // pred_check_branch
        %398 = sbr.rel (%p396) target = $region48
      $region47: #{tpu_custom_call.1} parent=5 // pred_region
        %s399 = ssub.s32 %s15, 2
        // Predicated region
        $region49: #{tpu_custom_call.1} parent=47 // pred_check
          %p400 = pneg %p159
        $region50: #{tpu_custom_call.1} parent=47 // pred_check_branch
          %402 = sbr.rel (%p400) target = $region52
        $region51: #{tpu_custom_call.1} parent=47 // pred_region
          %s403 = sand.u32 %s144, 1
          %s404 = scalar_lea.sflag [#allocation4], %s403
          %s405 = sand.u32 %s144, 1
          %s406 = smul.addr %s405, 2
          %s407 = scalar_lea.vmem [#allocation5], %s406
          %408 = dma.done %s404, 32
        $region52: #{tpu_custom_call.1} parent=47 // pred_fallthru
          _
      $region48: #{tpu_custom_call.1} parent=5 // pred_fallthru
        _
    $region6: #{tpu_custom_call.1} parent=1 // loop_footer
      %s19 = sadd.s32 1, %s15
    $region7: #{tpu_custom_call.1} parent=1 // loop_footer_branch
      %14 = sbr.rel target = $region3
    $region8: #{tpu_custom_call.1} parent=1 // loop_exit
      _
    %409 = vsyncpa [#allocation3], 1
    %s410 = scalar_lea.sflag [#allocation3], 1
    %411 = vsyncpa %s410, 1
    %412 = vsyncpa [#allocation4], 1
    %s413 = scalar_lea.sflag [#allocation4], 1
    %414 = vsyncpa %s413, 1

</llo_original>
